<compile_context>
chip_gen: v5e
topology: v5e:2x2
jax: 0.10.0
libtpu: 0.0.40
codegen_flags: <defaults>
</compile_context>

<pallas_src>
import jax
import jax.numpy as jnp
from jax.experimental import pallas as pl
from jax.experimental.pallas import tpu as pltpu


def _round_up(x, m):
    return (x + m - 1) // m * m


def _pick_tm(M, D, itemsize, target_bytes=2 * 1024 * 1024, max_tm=4096):
    """Row-tile size: multiple of 128, ~target_bytes per input buffer."""
    tm = target_bytes // max(D * itemsize, 1)
    tm = max(128, min(max_tm, (tm // 128) * 128))
    tm = min(tm, _round_up(M, 128))   # no need to exceed the problem size
    return tm


# ----------------------------------------------------------------------------
# Pallas kernel:  o[O, TM] = w[O, D] @ x[TM, D]^T + b[O]
#   b_ref : SMEM (O,)      f32
#   x_ref : VMEM (TM, D)   streamed row tile
#   w_ref : VMEM (O, D)    resident across grid
#   o_ref : VMEM (O, TM)   lane-dense output tile
# ----------------------------------------------------------------------------
def _linear_head_kernel(b_ref, x_ref, w_ref, o_ref):
    acc = jax.lax.dot_general(
        w_ref[...], x_ref[...],
        dimension_numbers=(((1,), (1,)), ((), ())),   # contract over D
        preferred_element_type=jnp.float32,
    )                                                  # (O, TM) f32
    out_dim = o_ref.shape[0]                           # static: 1 or 2
    if out_dim == 1:
        acc = acc + b_ref[0]
    else:
        row = jax.lax.broadcasted_iota(jnp.int32, acc.shape, 0)
        bias = b_ref[0]
        for k in range(1, out_dim):
            bias = jnp.where(row == k, b_ref[k], bias)
        acc = acc + bias
    o_ref[...] = acc.astype(o_ref.dtype)


def linear_head_pallas(x2d, w, b, *, tm=None, compute_dtype=None):
    """x2d: (M, D), w: (O, D) (torch Linear.weight layout), b: (O,) -> (M, O) f32."""
    M, D = x2d.shape
    O = w.shape[0]

    if compute_dtype is not None:
        # TODO(synk): a wrapper-side cast adds its own HBM pass; only worth it
        # if x is reused across several heads.  Default path stays f32.
        x2d = x2d.astype(compute_dtype)
        w = w.astype(compute_dtype)
    b = b.astype(jnp.float32)

    itemsize = x2d.dtype.itemsize
    if tm is None:
        tm = _pick_tm(M, D, itemsize)
    else:
        tm = max(128, min(_round_up(tm, 128), _round_up(M, 128)))

    grid = (pl.cdiv(M, tm),)   # partial last block handled by Pallas (no pad)

    out_om = pl.pallas_call(
        _linear_head_kernel,
        out_shape=jax.ShapeDtypeStruct((O, M), jnp.float32),
        grid=grid,
        in_specs=[
            pl.BlockSpec(memory_space=pltpu.MemorySpace.SMEM),   # bias (O,)
            pl.BlockSpec((tm, D), lambda i: (i, 0)),             # streamed x tile
            pl.BlockSpec((O, D), lambda i: (0, 0)),              # resident weight
        ],
        out_specs=pl.BlockSpec((O, tm), lambda i: (0, i)),       # lane-dense out
        compiler_params=pltpu.CompilerParams(
            dimension_semantics=("parallel",),      # megacore-shard the M axis
            vmem_limit_bytes=32 * 1024 * 1024,      # safe on v5e/v6e/v7x
        ),
        cost_estimate=pl.CostEstimate(
            flops=2 * M * D * O,
            transcendentals=0,
            bytes_accessed=itemsize * (M * D + O * D) + 4 * O * M,
        ),
    )(b, x2d, w)

    return out_om.T                                   # (M, O); layout plumbing


# ----------------------------------------------------------------------------
# OutputAdapter parameters + forward (mirrors the PyTorch module)
# ----------------------------------------------------------------------------
_BASE_HEADS = {
    "tsp": 1, "cvrp": 2, "cvrptw": 2, "op": 1, "kp": 1,
    "mvc": 1, "upms": 1, "jssp": 1,
}
_FINETUNE_HEADS = {
    "trp": 1, "sop": 1, "pctsp": 1, "dcvrp": 2, "ocvrp": 2,
    "sdcvrp": 2, "mis": 1, "mclp": 1, "ossp": 1,
}


def init_output_adapter(key, dim_emb, is_finetuning=False):
    """Synthetic init matching nn.Linear: weight (out, dim_emb), bias (out,),
    U(-1/sqrt(dim_emb), 1/sqrt(dim_emb)). Weight kept in torch layout (O, D)."""
    heads = dict(_BASE_HEADS)
    if is_finetuning:
        heads.update(_FINETUNE_HEADS)
    bound = 1.0 / float(dim_emb) ** 0.5
    params = {}
    for name, out_dim in sorted(heads.items()):
        key, kw, kb = jax.random.split(key, 3)
        w = jax.random.uniform(kw, (out_dim, dim_emb), jnp.float32, -bound, bound)
        bb = jax.random.uniform(kb, (out_dim,), jnp.float32, -bound, bound)
        params[name] = {"w": w, "b": bb, "out_dim": out_dim}
    return params


def output_adapter_forward(params, state, problem_data, *, compute_dtype=None):
    """state: (B, N, D) f32.  Returns (B, N_eff) for 1-output heads,
       (B, N_eff, 2) for 2-output heads (torch .squeeze(-1) semantics)."""
    name = problem_data["problem_name"]
    if name == "upms":
        # TODO(synk): node-axis slice is a wrapper-side XLA copy; folding it
        # into the index_map (Element offsets + scalar prefetch) would save
        # one pass for sliced heads, at significant complexity cost.
        state = state[:, -problem_data["num_machines"]:]
    elif name in ("jssp", "ossp"):
        state = state[:, :problem_data["num_tasks"]]

    B, N, D = state.shape
    p = params[name]
    out_dim = p["out_dim"]

    x2d = state.reshape(B * N, D)                  # contiguous -> free reshape
    y2d = linear_head_pallas(x2d, p["w"], p["b"], compute_dtype=compute_dtype)
    y = y2d.reshape(B, N, out_dim)
    if out_dim == 1:
        y = jnp.squeeze(y, axis=-1)
    return y


# ----------------------------------------------------------------------------
if __name__ == "__main__":
    key = jax.random.PRNGKey(0)
    k_params, k_state = jax.random.split(key)

    B, N, D = 2, 8, 32
    params = init_output_adapter(k_params, D, is_finetuning=False)
    state = jax.random.normal(k_state, (B, N, D), jnp.float32)

    # tsp head: (B, N)
    scores_tsp = output_adapter_forward(params, state, {"problem_name": "tsp"})
    # cvrp head: (B, N, 2)
    scores_cvrp = output_adapter_forward(params, state, {"problem_name": "cvrp"})
    # upms head with slicing: (B, num_machines)
    scores_upms = output_adapter_forward(
        params, state, {"problem_name": "upms", "num_machines": 4})
    # jssp head with slicing (exercises non-128-aligned M = B*num_tasks)
    scores_jssp = output_adapter_forward(
        params, state, {"problem_name": "jssp", "num_tasks": 5})

    jax.block_until_ready((scores_tsp, scores_cvrp, scores_upms, scores_jssp))

    # sanity-check against pure-JAX reference (w stored (O, D), torch layout)
    def ref(name, s):
        p = params[name]
        y = s @ p["w"].T + p["b"]
        return jnp.squeeze(y, -1) if p["out_dim"] == 1 else y

    assert scores_tsp.shape == (B, N)
    assert scores_cvrp.shape == (B, N, 2)
    assert scores_upms.shape == (B, 4)
    assert scores_jssp.shape == (B, 5)
    assert jnp.allclose(scores_tsp, ref("tsp", state), atol=1e-5)
    assert jnp.allclose(scores_cvrp, ref("cvrp", state), atol=1e-5)
    assert jnp.allclose(scores_upms, ref("upms", state[:, -4:]), atol=1e-5)
    assert jnp.allclose(scores_jssp, ref("jssp", state[:, :5]), atol=1e-5)

    print("KERNEL_OK")
</pallas_src>

<mosaic_0001>
module attributes {stable_mosaic.version = 11 : i64} {
  func.func @_linear_head_kernel(%arg0: i32, %arg1: memref<1xf32, #tpu.memory_space<smem>>, %arg2: memref<128x32xf32, #tpu.memory_space<vmem>>, %arg3: memref<1x32xf32, #tpu.memory_space<vmem>>, %arg4: memref<1x128xf32, #tpu.memory_space<vmem>>) attributes {dimension_semantics = [#tpu.dimension_semantics<parallel>], iteration_bounds = array<i64: 1>, scalar_prefetch = 0 : i64, scratch_operands = 0 : i64, tpu.core_type = #tpu.core_type<tc>, window_params = [{transform_indices = @transform_0, window_bounds = array<i64: 1>}, {transform_indices = @transform_1, window_bounds = array<i64: 128, 32>}, {pipeline_mode = #tpu.pipeline_mode<synchronous>, transform_indices = @transform_2, window_bounds = array<i64: 1, 32>}, {transform_indices = @transform_3, window_bounds = array<i64: 1, 128>}]} {
    %c0 = arith.constant 0 : index
    %c0_0 = arith.constant 0 : index
    %0 = vector.load %arg3[%c0, %c0_0] : memref<1x32xf32, #tpu.memory_space<vmem>>, vector<1x32xf32>
    %c0_1 = arith.constant 0 : index
    %c0_2 = arith.constant 0 : index
    %1 = vector.load %arg2[%c0_1, %c0_2] : memref<128x32xf32, #tpu.memory_space<vmem>>, vector<128x32xf32>
    %cst = arith.constant dense<0.000000e+00> : vector<1x128xf32>
    %2 = tpu.matmul %0, %1, %cst {dimension_numbers = #tpu.dot_dimension_numbers<[1], [1], [0], [0], [0, 0, 1, 0], [], []>} : vector<1x32xf32>, vector<128x32xf32>, vector<1x128xf32> -> vector<1x128xf32>
    %c0_3 = arith.constant 0 : index
    %3 = memref.load %arg1[%c0_3] : memref<1xf32, #tpu.memory_space<smem>>
    %4 = vector.broadcast %3 : f32 to vector<1x128xf32>
    %5 = arith.addf %2, %4 : vector<1x128xf32>
    %c0_4 = arith.constant 0 : index
    %c0_5 = arith.constant 0 : index
    %6 = vector.load %arg4[%c0_4, %c0_5] : memref<1x128xf32, #tpu.memory_space<vmem>>, vector<1x128xf32>
    tpu.vector_store %arg4[%c0_4, %c0_5], %5 {strides = array<i32>} : memref<1x128xf32, #tpu.memory_space<vmem>>, vector<1x128xf32>,
    return
  }
  func.func @transform_0(%arg0: i32) -> i32 {
    %c0_i32 = arith.constant 0 : i32
    %c0_i32_0 = arith.constant 0 : i32
    return %c0_i32 : i32
  }
  func.func @transform_1(%arg0: i32) -> (i32, i32) {
    %c0_i32 = arith.constant 0 : i32
    %c0_i32_0 = arith.constant 0 : i32
    return %arg0, %c0_i32 : i32, i32
  }
  func.func @transform_2(%arg0: i32) -> (i32, i32) {
    %c0_i32 = arith.constant 0 : i32
    %c0_i32_0 = arith.constant 0 : i32
    %c0_i32_1 = arith.constant 0 : i32
    return %c0_i32, %c0_i32_0 : i32, i32
  }
  func.func @transform_3(%arg0: i32) -> (i32, i32) {
    %c0_i32 = arith.constant 0 : i32
    %c0_i32_0 = arith.constant 0 : i32
    return %c0_i32, %arg0 : i32, i32
  }
}

</mosaic_0001>

<llo_original>
// kernel: tpu_custom_call.1
$region0: #{tpu_custom_call.1}
  #allocation0 [shape = 'u32[]', space=smem, size = 0x4, offset = 0x4, fixed_abs, tag = 'smem constant byte address 0x4 - core index']
  #allocation1 [shape = 'u32[72,128]{1,0:T(1,128)}', space=vmem, size = 0x9000, scoped, tag = 'internal scratch']
  #allocation2 [shape = 'f32[1]{0:T(128)S(6)}', space=smem, size = 0x200, scoped, tag = 'scoped memory for tpu_custom_call.1']
  %s0 = inlined_call_operand.<no memory space> [shape: f32[1], index: 0, kind: input, shape index: {}]
  %s1 = inlined_call_operand.hbm [shape: f32[16,32], index: 1, kind: input, shape index: {}]
  %s2 = inlined_call_operand.vmem [shape: f32[1,32], index: 2, kind: input, shape index: {}]
  %s3 = inlined_call_operand.hbm [shape: f32[1,16], index: 3, kind: output, shape index: {}]
  %s4 = sld [smem:[#allocation0]]
  $region26: #{tpu_custom_call.1} parent=0
    _
  %s6 = ssub.s32 1, %s4
  %s7 = scalar_select 0, %s6, %s4
  %8 = sst [smem:[#allocation2]] %s0
  $region1: #{tpu_custom_call.1} parent=0
    #allocation3 [shape = 'u8[65536]{0}', space=vmem, size = 0x10000, scoped, tag = 'input window, operand 1, single buffered']
    #allocation4 [shape = 's32[1]{0}', space=sflag, size = 0x4, scoped, tag = 'scoped memory for tpu_custom_call.1']
    #allocation5 [shape = 's32[1]{0}', space=sflag, size = 0x4, scoped, tag = 'scoped memory for tpu_custom_call.1']
    #allocation6 [shape = 'u8[512]{0}', space=vmem, size = 0x400, scoped, tag = 'output window, operand 0, single buffered']
    %9 = vsyncpa [#allocation4], 0
    %10 = vsyncpa [#allocation5], 0
    // Predicated region
    $region2: #{tpu_custom_call.1} parent=1 // pred_check
      _
    $region3: #{tpu_custom_call.1} parent=1 // pred_check_branch
      %12 = sbr.rel (0) target = $region5
    $region4: #{tpu_custom_call.1} parent=1 // pred_region
      _
    $region5: #{tpu_custom_call.1} parent=1 // pred_fallthru
      _
    // Predicated region
    $region6: #{tpu_custom_call.1} parent=1 // pred_check
      _
    $region7: #{tpu_custom_call.1} parent=1 // pred_check_branch
      %14 = sbr.rel (0) target = $region9
    $region8: #{tpu_custom_call.1} parent=1 // pred_region
      %16 = vsyncadd [#allocation4], 1792
      %s17 = sshll.u32 %s1, 4
      %s18 = int_to_ptr.hbm [resolvable:$true] %s17
      %s19 = sshll.u32 [#allocation3], 4
      %s20 = int_to_ptr.vmem [resolvable:$true] %s19
      %25 = dma.hbm_to_vmem [thread:$0]  %s18, 256, %s20, [#allocation4], 128, 128, 8
    $region9: #{tpu_custom_call.1} parent=1 // pred_fallthru
      _
    // Predicated region
    $region10: #{tpu_custom_call.1} parent=1 // pred_check
      _
    $region11: #{tpu_custom_call.1} parent=1 // pred_check_branch
      %27 = sbr.rel (0) target = $region13
    $region12: #{tpu_custom_call.1} parent=1 // pred_region
      _
    $region13: #{tpu_custom_call.1} parent=1 // pred_fallthru
      _
    // Predicated region
    $region14: #{tpu_custom_call.1} parent=1 // pred_check
      _
    $region15: #{tpu_custom_call.1} parent=1 // pred_check_branch
      %29 = sbr.rel (0) target = $region17
    $region16: #{tpu_custom_call.1} parent=1 // pred_region
      %31 = dma.done [#allocation4], 2048
    $region17: #{tpu_custom_call.1} parent=1 // pred_fallthru
      _
    %v32 = vld [vmem:[%s2] sm:$0x1]
    %v33 = vld [vmem:[#allocation3] sm:$0xff]
    %v34 = vld [vmem:[#allocation3 + $0x8] sm:$0xff]
    %v35 = vld [vmem:[#allocation3 + $0x10] sm:$0xff]
    %v36 = vld [vmem:[#allocation3 + $0x18] sm:$0xff]
    %v37 = vld [vmem:[#allocation3 + $0x20] sm:$0xff]
    %v38 = vld [vmem:[#allocation3 + $0x28] sm:$0xff]
    %v39 = vld [vmem:[#allocation3 + $0x30] sm:$0xff]
    %v40 = vld [vmem:[#allocation3 + $0x38] sm:$0xff]
    %v41 = vld [vmem:[#allocation3 + $0x40] sm:$0xff]
    %v42 = vld [vmem:[#allocation3 + $0x48] sm:$0xff]
    %v43 = vld [vmem:[#allocation3 + $0x50] sm:$0xff]
    %v44 = vld [vmem:[#allocation3 + $0x58] sm:$0xff]
    %v45 = vld [vmem:[#allocation3 + $0x60] sm:$0xff]
    %v46 = vld [vmem:[#allocation3 + $0x68] sm:$0xff]
    %v47 = vld [vmem:[#allocation3 + $0x70] sm:$0xff]
    %v48 = vld [vmem:[#allocation3 + $0x78] sm:$0xff]
    %s49 = sld [smem:[#allocation2]]
    %v50 = vstv %s49
    %vm51 = vcmask 261120
    %v53 = vsel %vm51, %v32, 0
    %v56 = vsel %vm51, %v33, 0
    %v59 = vsel %vm51, %v34, 0
    %v62 = vsel %vm51, %v35, 0
    %v65 = vsel %vm51, %v36, 0
    %v68 = vsel %vm51, %v37, 0
    %v71 = vsel %vm51, %v38, 0
    %v74 = vsel %vm51, %v39, 0
    %v77 = vsel %vm51, %v40, 0
    %v80 = vsel %vm51, %v41, 0
    %v83 = vsel %vm51, %v42, 0
    %v86 = vsel %vm51, %v43, 0
    %v89 = vsel %vm51, %v44, 0
    %v92 = vsel %vm51, %v45, 0
    %v95 = vsel %vm51, %v46, 0
    %v98 = vsel %vm51, %v47, 0
    %v101 = vsel %vm51, %v48, 0
    %103 = vmatpush.xpose.msra.mxu0 %v101
    %104 = vmatpush.xpose.msra.mxu0 %v98
    %105 = vmatpush.xpose.msra.mxu0 %v95
    %106 = vmatpush.xpose.msra.mxu0 %v92
    %107 = vmatpush.xpose.msra.mxu0 %v89
    %108 = vmatpush.xpose.msra.mxu0 %v86
    %109 = vmatpush.xpose.msra.mxu0 %v83
    %110 = vmatpush.xpose.msra.mxu0 %v80
    %111 = vmatpush.xpose.msra.mxu0 %v77
    %112 = vmatpush.xpose.msra.mxu0 %v74
    %113 = vmatpush.xpose.msra.mxu0 %v71
    %114 = vmatpush.xpose.msra.mxu0 %v68
    %115 = vmatpush.xpose.msra.mxu0 %v65
    %116 = vmatpush.xpose.msra.mxu0 %v62
    %117 = vmatpush.xpose.msra.mxu0 %v59
    %118 = vmatpush.xpose.msra.mxu0 %v56
    %119 = vmatmul.f32.gmra.mxu0 %v53
    %v120 = vpop.f32.mrf.mxu0
    %v121 = vadd.f32 %v50, %v120
    %122 = vdwg.mxu0
    %123 = vst [vmem:[#allocation6] sm:$0x1] %v121
    // Predicated region
    $region18: #{tpu_custom_call.1} parent=1 // pred_check
      _
    $region19: #{tpu_custom_call.1} parent=1 // pred_check_branch
      %125 = sbr.rel (0) target = $region21
    $region20: #{tpu_custom_call.1} parent=1 // pred_region
      %127 = vsyncadd [#allocation5], 0
      %s129 = sshll.u32 [#allocation6], 4
      %s130 = int_to_ptr.vmem [resolvable:$true] %s129
      %s131 = sshll.u32 %s3, 4
      %s132 = int_to_ptr.hbm [resolvable:$true] %s131
      %134 = dma.vmem_to_hbm [thread:$0]  %s130, 16, %s132, [#allocation5]
    $region21: #{tpu_custom_call.1} parent=1 // pred_fallthru
      _
    // Predicated region
    $region22: #{tpu_custom_call.1} parent=1 // pred_check
      _
    $region23: #{tpu_custom_call.1} parent=1 // pred_check_branch
      %136 = sbr.rel (0) target = $region25
    $region24: #{tpu_custom_call.1} parent=1 // pred_region
      %138 = dma.done [#allocation5], 16
    $region25: #{tpu_custom_call.1} parent=1 // pred_fallthru
      _
    %139 = vsyncpa [#allocation4], 1
    %140 = vsyncpa [#allocation5], 1

</llo_original>
